<compile_context>
chip_gen: v7x
topology: tpu7x:2x2x1
jax: 0.10.0
libtpu: 0.0.40
codegen_flags: <defaults>
</compile_context>

<pallas_src>
import functools

import jax
import jax.numpy as jnp
from jax.experimental import pallas as pl
from jax.experimental.pallas import tpu as pltpu


def _round_up(x: int, m: int) -> int:
    return (x + m - 1) // m * m


def level_classifier_kernel(
    x_ref, info_ref,
    bn_scale_ref, bn_bias_ref,
    emb_ref,
    wg_a_ref, wg_b_ref, bg_ref,
    w1_ref, b1_ref, w2_ref,
    out_ref,
    *, n_valid: int,
):
    x = x_ref[...]                                                  # (TB, D)  f32
    info = info_ref[...]                                            # (TB, UP) f32 one-hot (zero-padded)

    # BatchNorm1d (inference) folded to a single affine: x * scale + bias.
    xn = x * bn_scale_ref[...] + bn_bias_ref[...]

    # Upper-level embedding lookup fused in-kernel: one-hot @ embeddings (f32 MXU, tiny K).
    u = jnp.dot(info, emb_ref[...], preferred_element_type=jnp.float32)   # (TB, D) f32

    # GatedSum gate: Linear(2D -> 1) on concat([xn, u]) == row-dot with the two
    # weight halves.  Done on VPU (mul) + XLU (lane reduce) instead of an N=1 MXU matmul.
    gate_logit = jnp.sum(xn * wg_a_ref[...] + u * wg_b_ref[...],
                         axis=-1, keepdims=True) + bg_ref[...]      # (TB, 1)
    gate = jax.nn.sigmoid(gate_logit)
    m = gate * xn + (1.0 - gate) * u                                # (TB, D) f32

    # FeedForward: Linear(D->D) + ReLU  (dropout p=0.1 is identity at eval time).
    h = jnp.dot(m.astype(jnp.bfloat16), w1_ref[...],
                preferred_element_type=jnp.float32) + b1_ref[...]
    h = jnp.maximum(h, 0.0)

    # Final Linear(D -> NP, bias=False).  NP is lane-padded to a multiple of 128;
    # pad lanes are masked so they contribute exactly 0 to the softmax.
    logits = jnp.dot(h.astype(jnp.bfloat16), w2_ref[...],
                     preferred_element_type=jnp.float32)            # (TB, NP)
    lane = jax.lax.broadcasted_iota(jnp.int32, logits.shape, 1)
    logits = jnp.where(lane < n_valid, logits, -1e30)

    # Numerically stable softmax; reciprocal goes to the (otherwise idle) EUP slot.
    logits = logits - jnp.max(logits, axis=-1, keepdims=True)
    e = jnp.exp(logits)
    inv = pl.reciprocal(jnp.sum(e, axis=-1, keepdims=True), approx=True)
    out_ref[...] = e * inv


def level_classifier(x, upper_info, params, *, block_b: int = 512, eps: float = 1e-5):
    """x: (B, D) f32, upper_info: (B, U) one-hot f32  ->  (B, N) softmax probs."""
    B, D = x.shape
    U = upper_info.shape[1]
    N = params["w2_t"].shape[1]

    # Fold BatchNorm running stats + affine into one (scale, bias) pair.
    bn_scale = params["bn_gamma"] * jax.lax.rsqrt(params["bn_var"] + eps)
    bn_bias = params["bn_beta"] - params["bn_mean"] * bn_scale

    # Lane padding: class axis of the output and the one-hot axis of the lookup
    # both padded to multiples of 128 (lane-dense stores, native MXU contraction).
    NP = _round_up(max(N, 128), 128)
    UP = _round_up(max(U, 128), 128)

    w1 = params["w1_t"].astype(jnp.bfloat16)
    w2 = jnp.pad(params["w2_t"], ((0, 0), (0, NP - N))).astype(jnp.bfloat16)
    emb = jnp.pad(params["upper_emb"].astype(jnp.float32), ((0, UP - U), (0, 0)))
    info = jnp.pad(upper_info.astype(jnp.float32), ((0, 0), (0, UP - U)))

    # Batch tiling: sublane-aligned tile (multiple of 8), padded batch.
    TB = min(_round_up(B, 8), _round_up(block_b, 8))
    BP = _round_up(B, TB)
    if BP != B:
        x = jnp.pad(x, ((0, BP - B), (0, 0)))
        info = jnp.pad(info, ((0, BP - B), (0, 0)))

    args = (x, info, bn_scale, bn_bias, emb,
            params["wg_a"], params["wg_b"], params["bg"],
            w1, params["b1"], w2)

    x_spec = pl.BlockSpec((TB, D), lambda i: (i, 0))
    info_spec = pl.BlockSpec((TB, UP), lambda i: (i, 0))

    def resident(a):
        nd = a.ndim
        return pl.BlockSpec(a.shape, lambda i, _nd=nd: (0,) * _nd)

    in_specs = [x_spec, info_spec] + [resident(a) for a in args[2:]]

    flops = 2 * BP * (UP * D + D * D + D * NP) + 8 * BP * D
    bytes_accessed = sum(int(a.size * a.dtype.itemsize) for a in args) + BP * NP * 4
    transcendentals = BP * (NP + 2)

    out = pl.pallas_call(
        functools.partial(level_classifier_kernel, n_valid=N),
        out_shape=jax.ShapeDtypeStruct((BP, NP), jnp.float32),
        grid=(BP // TB,),
        in_specs=in_specs,
        out_specs=pl.BlockSpec((TB, NP), lambda i: (i, 0)),
        compiler_params=pltpu.CompilerParams(
            dimension_semantics=("parallel",)),
        cost_estimate=pl.CostEstimate(
            flops=flops,
            transcendentals=transcendentals,
            bytes_accessed=bytes_accessed),
    )(*args)

    return out[:B, :N]


def make_params(key, D, U, N):
    ks = jax.random.split(key, 8)
    scale = 0.02
    return dict(
        # BatchNorm1d affine + running stats, (1, D) so they broadcast over batch.
        bn_gamma=jnp.ones((1, D), jnp.float32),
        bn_beta=jnp.zeros((1, D), jnp.float32),
        bn_mean=0.1 * jax.random.normal(ks[0], (1, D), jnp.float32),
        bn_var=jnp.ones((1, D), jnp.float32)
        + 0.1 * jnp.abs(jax.random.normal(ks[1], (1, D), jnp.float32)),
        # upper_level_embeddings (module inits to zeros; random here to exercise the gated path).
        upper_emb=scale * jax.random.normal(ks[2], (U, D), jnp.float32),
        # GatedSum gate Linear(2D -> 1): weight split into the xn-half / u-half, as (1, D) rows.
        wg_a=scale * jax.random.normal(ks[3], (1, D), jnp.float32),
        wg_b=scale * jax.random.normal(ks[4], (1, D), jnp.float32),
        bg=jnp.zeros((1, 1), jnp.float32),
        # FeedForward Linear(D -> D) (stored transposed for x @ W).
        w1_t=scale * jax.random.normal(ks[5], (D, D), jnp.float32),
        b1=jnp.zeros((1, D), jnp.float32),
        # Final Linear(D -> N, bias=False) (stored transposed).
        w2_t=scale * jax.random.normal(ks[6], (D, N), jnp.float32),
    )


def reference(x, upper_info, params, eps=1e-5):
    """Pure-JAX f32 reference with the exact module semantics (eval mode)."""
    xn = (x - params["bn_mean"]) * jax.lax.rsqrt(params["bn_var"] + eps)
    xn = xn * params["bn_gamma"] + params["bn_beta"]
    u = upper_info @ params["upper_emb"]
    gate_logit = jnp.sum(xn * params["wg_a"] + u * params["wg_b"],
                         axis=-1, keepdims=True) + params["bg"]
    gate = jax.nn.sigmoid(gate_logit)
    m = gate * xn + (1.0 - gate) * u
    h = jnp.maximum(m @ params["w1_t"] + params["b1"], 0.0)
    logits = h @ params["w2_t"]
    return jax.nn.softmax(logits, axis=-1)


if __name__ == "__main__":
    B, D, U, N = 16, 128, 8, 16  # batch, embedding_dim, upper_node_num, node_num

    key = jax.random.PRNGKey(0)
    k_x, k_cls, k_par = jax.random.split(key, 3)

    x = jax.random.normal(k_x, (B, D), jnp.float32)
    cls_idx = jax.random.randint(k_cls, (B,), 0, U)
    upper_info = jax.nn.one_hot(cls_idx, U, dtype=jnp.float32)     # (B, U) one-hot

    params = make_params(k_par, D, U, N)

    # block_b=8 so the (padded) batch of 16 is processed as 2 grid tiles; at
    # production batch sizes leave the default (512) so tiles amortize step overhead.
    out = level_classifier(x, upper_info, params, block_b=8)
    out = jax.block_until_ready(out)

    ref = reference(x, upper_info, params)

    assert out.shape == (B, N)
    assert bool(jnp.all(jnp.isfinite(out)))
    assert bool(jnp.allclose(jnp.sum(out, axis=-1), 1.0, atol=5e-3))
    assert bool(jnp.allclose(out, ref, atol=2e-3)), float(jnp.max(jnp.abs(out - ref)))
    print("KERNEL_OK")
</pallas_src>

<mosaic_0001>
module attributes {stable_mosaic.version = 11 : i64} {
  func.func @level_classifier_kernel(%arg0: i32, %arg1: memref<8x128xf32, #tpu.memory_space<vmem>>, %arg2: memref<8x128xf32, #tpu.memory_space<vmem>>, %arg3: memref<1x128xf32, #tpu.memory_space<vmem>>, %arg4: memref<1x128xf32, #tpu.memory_space<vmem>>, %arg5: memref<128x128xf32, #tpu.memory_space<vmem>>, %arg6: memref<1x128xf32, #tpu.memory_space<vmem>>, %arg7: memref<1x128xf32, #tpu.memory_space<vmem>>, %arg8: memref<1x1xf32, #tpu.memory_space<vmem>>, %arg9: memref<128x128xbf16, #tpu.memory_space<vmem>>, %arg10: memref<1x128xf32, #tpu.memory_space<vmem>>, %arg11: memref<128x128xbf16, #tpu.memory_space<vmem>>, %arg12: memref<8x128xf32, #tpu.memory_space<vmem>>) attributes {dimension_semantics = [#tpu.dimension_semantics<parallel>], iteration_bounds = array<i64: 2>, scalar_prefetch = 0 : i64, scratch_operands = 0 : i64, tpu.core_type = #tpu.core_type<tc>, window_params = [{transform_indices = @transform_0, window_bounds = array<i64: 8, 128>}, {transform_indices = @transform_1, window_bounds = array<i64: 8, 128>}, {pipeline_mode = #tpu.pipeline_mode<synchronous>, transform_indices = @transform_2, window_bounds = array<i64: 1, 128>}, {pipeline_mode = #tpu.pipeline_mode<synchronous>, transform_indices = @transform_3, window_bounds = array<i64: 1, 128>}, {pipeline_mode = #tpu.pipeline_mode<synchronous>, transform_indices = @transform_4, window_bounds = array<i64: 128, 128>}, {pipeline_mode = #tpu.pipeline_mode<synchronous>, transform_indices = @transform_5, window_bounds = array<i64: 1, 128>}, {pipeline_mode = #tpu.pipeline_mode<synchronous>, transform_indices = @transform_6, window_bounds = array<i64: 1, 128>}, {pipeline_mode = #tpu.pipeline_mode<synchronous>, transform_indices = @transform_7, window_bounds = array<i64: 1, 1>}, {pipeline_mode = #tpu.pipeline_mode<synchronous>, transform_indices = @transform_8, window_bounds = array<i64: 128, 128>}, {pipeline_mode = #tpu.pipeline_mode<synchronous>, transform_indices = @transform_9, window_bounds = array<i64: 1, 128>}, {pipeline_mode = #tpu.pipeline_mode<synchronous>, transform_indices = @transform_10, window_bounds = array<i64: 128, 128>}, {transform_indices = @transform_11, window_bounds = array<i64: 8, 128>}]} {
    %c0 = arith.constant 0 : index
    %c0_0 = arith.constant 0 : index
    %0 = vector.load %arg1[%c0, %c0_0] : memref<8x128xf32, #tpu.memory_space<vmem>>, vector<8x128xf32>
    %c0_1 = arith.constant 0 : index
    %c0_2 = arith.constant 0 : index
    %1 = vector.load %arg2[%c0_1, %c0_2] : memref<8x128xf32, #tpu.memory_space<vmem>>, vector<8x128xf32>
    %c0_3 = arith.constant 0 : index
    %c0_4 = arith.constant 0 : index
    %2 = vector.load %arg3[%c0_3, %c0_4] : memref<1x128xf32, #tpu.memory_space<vmem>>, vector<1x128xf32>
    %3 = vector.broadcast %2 : vector<1x128xf32> to vector<8x128xf32>
    %4 = arith.mulf %0, %3 : vector<8x128xf32>
    %c0_5 = arith.constant 0 : index
    %c0_6 = arith.constant 0 : index
    %5 = vector.load %arg4[%c0_5, %c0_6] : memref<1x128xf32, #tpu.memory_space<vmem>>, vector<1x128xf32>
    %6 = vector.broadcast %5 : vector<1x128xf32> to vector<8x128xf32>
    %7 = arith.addf %4, %6 : vector<8x128xf32>
    %c0_7 = arith.constant 0 : index
    %c0_8 = arith.constant 0 : index
    %8 = vector.load %arg5[%c0_7, %c0_8] : memref<128x128xf32, #tpu.memory_space<vmem>>, vector<128x128xf32>
    %cst = arith.constant dense<0.000000e+00> : vector<8x128xf32>
    %9 = tpu.matmul %1, %8, %cst {dimension_numbers = #tpu.dot_dimension_numbers<[1], [0], [0], [1], [0, 0, 1, 1], [], []>} : vector<8x128xf32>, vector<128x128xf32>, vector<8x128xf32> -> vector<8x128xf32>
    %c0_9 = arith.constant 0 : index
    %c0_10 = arith.constant 0 : index
    %10 = vector.load %arg6[%c0_9, %c0_10] : memref<1x128xf32, #tpu.memory_space<vmem>>, vector<1x128xf32>
    %11 = vector.broadcast %10 : vector<1x128xf32> to vector<8x128xf32>
    %12 = arith.mulf %7, %11 : vector<8x128xf32>
    %c0_11 = arith.constant 0 : index
    %c0_12 = arith.constant 0 : index
    %13 = vector.load %arg7[%c0_11, %c0_12] : memref<1x128xf32, #tpu.memory_space<vmem>>, vector<1x128xf32>
    %14 = vector.broadcast %13 : vector<1x128xf32> to vector<8x128xf32>
    %15 = arith.mulf %9, %14 : vector<8x128xf32>
    %16 = arith.addf %12, %15 : vector<8x128xf32>
    %cst_13 = arith.constant dense<0.000000e+00> : vector<8xf32>
    %17 = vector.multi_reduction <add>, %16, %cst_13 [1] : vector<8x128xf32> to vector<8xf32>
    %18 = vector.shape_cast %17 : vector<8xf32> to vector<8x1xf32>
    %c0_14 = arith.constant 0 : index
    %c0_15 = arith.constant 0 : index
    %19 = vector.load %arg8[%c0_14, %c0_15] : memref<1x1xf32, #tpu.memory_space<vmem>>, vector<1x1xf32>
    %20 = vector.broadcast %19 : vector<1x1xf32> to vector<8x1xf32>
    %21 = arith.addf %18, %20 : vector<8x1xf32>
    %22 = arith.negf %21 : vector<8x1xf32>
    %23 = math.exp %22 : vector<8x1xf32>
    %cst_16 = arith.constant 1.000000e+00 : f32
    %24 = vector.broadcast %cst_16 : f32 to vector<8x1xf32>
    %25 = arith.addf %24, %23 : vector<8x1xf32>
    %26 = arith.divf %24, %25 : vector<8x1xf32>
    %27 = vector.broadcast %26 : vector<8x1xf32> to vector<8x128xf32>
    %28 = arith.mulf %27, %7 : vector<8x128xf32>
    %cst_17 = arith.constant 1.000000e+00 : f32
    %29 = vector.broadcast %cst_17 : f32 to vector<8x1xf32>
    %30 = arith.subf %29, %26 : vector<8x1xf32>
    %31 = vector.broadcast %30 : vector<8x1xf32> to vector<8x128xf32>
    %32 = arith.mulf %31, %9 : vector<8x128xf32>
    %33 = arith.addf %28, %32 : vector<8x128xf32>
    %34 = arith.truncf %33 : vector<8x128xf32> to vector<8x128xbf16>
    %c0_18 = arith.constant 0 : index
    %c0_19 = arith.constant 0 : index
    %35 = vector.load %arg9[%c0_18, %c0_19] : memref<128x128xbf16, #tpu.memory_space<vmem>>, vector<128x128xbf16>
    %cst_20 = arith.constant dense<0.000000e+00> : vector<8x128xf32>
    %36 = tpu.matmul %34, %35, %cst_20 {dimension_numbers = #tpu.dot_dimension_numbers<[1], [0], [0], [1], [0, 0, 1, 1], [], []>} : vector<8x128xbf16>, vector<128x128xbf16>, vector<8x128xf32> -> vector<8x128xf32>
    %c0_21 = arith.constant 0 : index
    %c0_22 = arith.constant 0 : index
    %37 = vector.load %arg10[%c0_21, %c0_22] : memref<1x128xf32, #tpu.memory_space<vmem>>, vector<1x128xf32>
    %38 = vector.broadcast %37 : vector<1x128xf32> to vector<8x128xf32>
    %39 = arith.addf %36, %38 : vector<8x128xf32>
    %cst_23 = arith.constant 0.000000e+00 : f32
    %40 = vector.broadcast %cst_23 : f32 to vector<8x128xf32>
    %41 = arith.maximumf %39, %40 : vector<8x128xf32>
    %42 = arith.truncf %41 : vector<8x128xf32> to vector<8x128xbf16>
    %c0_24 = arith.constant 0 : index
    %c0_25 = arith.constant 0 : index
    %43 = vector.load %arg11[%c0_24, %c0_25] : memref<128x128xbf16, #tpu.memory_space<vmem>>, vector<128x128xbf16>
    %cst_26 = arith.constant dense<0.000000e+00> : vector<8x128xf32>
    %44 = tpu.matmul %42, %43, %cst_26 {dimension_numbers = #tpu.dot_dimension_numbers<[1], [0], [0], [1], [0, 0, 1, 1], [], []>} : vector<8x128xbf16>, vector<128x128xbf16>, vector<8x128xf32> -> vector<8x128xf32>
    %45 = tpu.iota {dimensions = array<i32: 1>} : vector<8x128xi32>
    %c16_i32 = arith.constant 16 : i32
    %46 = vector.broadcast %c16_i32 : i32 to vector<8x128xi32>
    %47 = arith.cmpi slt, %45, %46 : vector<8x128xi32>
    %cst_27 = arith.constant -1.000000e+30 : f32
    %48 = vector.broadcast %cst_27 : f32 to vector<8x128xf32>
    %49 = arith.select %47, %44, %48 : vector<8x128xi1>, vector<8x128xf32>
    %cst_28 = arith.constant dense<0xFF800000> : vector<8xf32>
    %50 = vector.multi_reduction <maximumf>, %49, %cst_28 [1] : vector<8x128xf32> to vector<8xf32>
    %51 = vector.shape_cast %50 : vector<8xf32> to vector<8x1xf32>
    %52 = vector.broadcast %51 : vector<8x1xf32> to vector<8x128xf32>
    %53 = arith.subf %49, %52 : vector<8x128xf32>
    %54 = math.exp %53 : vector<8x128xf32>
    %cst_29 = arith.constant dense<0.000000e+00> : vector<8xf32>
    %55 = vector.multi_reduction <add>, %54, %cst_29 [1] : vector<8x128xf32> to vector<8xf32>
    %56 = vector.shape_cast %55 : vector<8xf32> to vector<8x1xf32>
    %57 = tpu.reciprocal %56 {approx = true} : vector<8x1xf32> -> vector<8x1xf32>
    %58 = vector.broadcast %57 : vector<8x1xf32> to vector<8x128xf32>
    %59 = arith.mulf %54, %58 : vector<8x128xf32>
    %c0_30 = arith.constant 0 : index
    %c0_31 = arith.constant 0 : index
    %60 = vector.load %arg12[%c0_30, %c0_31] : memref<8x128xf32, #tpu.memory_space<vmem>>, vector<8x128xf32>
    tpu.vector_store %arg12[%c0_30, %c0_31], %59 {strides = array<i32>} : memref<8x128xf32, #tpu.memory_space<vmem>>, vector<8x128xf32>,
    return
  }
  func.func @transform_0(%arg0: i32) -> (i32, i32) {
    %c0_i32 = arith.constant 0 : i32
    %c0_i32_0 = arith.constant 0 : i32
    return %arg0, %c0_i32 : i32, i32
  }
  func.func @transform_1(%arg0: i32) -> (i32, i32) {
    %c0_i32 = arith.constant 0 : i32
    %c0_i32_0 = arith.constant 0 : i32
    return %arg0, %c0_i32 : i32, i32
  }
  func.func @transform_2(%arg0: i32) -> (i32, i32) {
    %c0_i32 = arith.constant 0 : i32
    %c0_i32_0 = arith.constant 0 : i32
    %c0_i32_1 = arith.constant 0 : i32
    return %c0_i32, %c0_i32_0 : i32, i32
  }
  func.func @transform_3(%arg0: i32) -> (i32, i32) {
    %c0_i32 = arith.constant 0 : i32
    %c0_i32_0 = arith.constant 0 : i32
    %c0_i32_1 = arith.constant 0 : i32
    return %c0_i32, %c0_i32_0 : i32, i32
  }
  func.func @transform_4(%arg0: i32) -> (i32, i32) {
    %c0_i32 = arith.constant 0 : i32
    %c0_i32_0 = arith.constant 0 : i32
    %c0_i32_1 = arith.constant 0 : i32
    return %c0_i32, %c0_i32_0 : i32, i32
  }
  func.func @transform_5(%arg0: i32) -> (i32, i32) {
    %c0_i32 = arith.constant 0 : i32
    %c0_i32_0 = arith.constant 0 : i32
    %c0_i32_1 = arith.constant 0 : i32
    return %c0_i32, %c0_i32_0 : i32, i32
  }
  func.func @transform_6(%arg0: i32) -> (i32, i32) {
    %c0_i32 = arith.constant 0 : i32
    %c0_i32_0 = arith.constant 0 : i32
    %c0_i32_1 = arith.constant 0 : i32
    return %c0_i32, %c0_i32_0 : i32, i32
  }
  func.func @transform_7(%arg0: i32) -> (i32, i32) {
    %c0_i32 = arith.constant 0 : i32
    %c0_i32_0 = arith.constant 0 : i32
    %c0_i32_1 = arith.constant 0 : i32
    return %c0_i32, %c0_i32_0 : i32, i32
  }
  func.func @transform_8(%arg0: i32) -> (i32, i32) {
    %c0_i32 = arith.constant 0 : i32
    %c0_i32_0 = arith.constant 0 : i32
    %c0_i32_1 = arith.constant 0 : i32
    return %c0_i32, %c0_i32_0 : i32, i32
  }
  func.func @transform_9(%arg0: i32) -> (i32, i32) {
    %c0_i32 = arith.constant 0 : i32
    %c0_i32_0 = arith.constant 0 : i32
    %c0_i32_1 = arith.constant 0 : i32
    return %c0_i32, %c0_i32_0 : i32, i32
  }
  func.func @transform_10(%arg0: i32) -> (i32, i32) {
    %c0_i32 = arith.constant 0 : i32
    %c0_i32_0 = arith.constant 0 : i32
    %c0_i32_1 = arith.constant 0 : i32
    return %c0_i32, %c0_i32_0 : i32, i32
  }
  func.func @transform_11(%arg0: i32) -> (i32, i32) {
    %c0_i32 = arith.constant 0 : i32
    %c0_i32_0 = arith.constant 0 : i32
    return %arg0, %c0_i32 : i32, i32
  }
}

</mosaic_0001>

<llo_original>
// kernel: tpu_custom_call.1
$region0: #{tpu_custom_call.1}
  #allocation0 [shape = 'u32[]', space=smem, size = 0x4, offset = 0x4, fixed_abs, tag = 'smem constant byte address 0x4 - core index']
  #allocation1 [shape = 'u32[144,128]{1,0:T(1,128)}', space=vmem, size = 0x12000, scoped, tag = 'internal scratch']
  #allocation2 [shape = 'f32[1,1]{1,0:T(1,128)S(1)}', space=vmem, size = 0x200, scoped, tag = 'scoped memory for tpu_custom_call.1']
  %s0 = inlined_call_operand.hbm [shape: f32[16,128], index: 0, kind: input, shape index: {}]
  %s1 = inlined_call_operand.hbm [shape: f32[16,128], index: 1, kind: input, shape index: {}]
  %s2 = inlined_call_operand.vmem [shape: f32[1,128], index: 2, kind: input, shape index: {}]
  %s3 = inlined_call_operand.vmem [shape: f32[1,128], index: 3, kind: input, shape index: {}]
  %s4 = inlined_call_operand.hbm [shape: f32[128,128], index: 4, kind: input, shape index: {}]
  %s5 = inlined_call_operand.vmem [shape: f32[1,128], index: 5, kind: input, shape index: {}]
  %s6 = inlined_call_operand.vmem [shape: f32[1,128], index: 6, kind: input, shape index: {}]
  %s7 = inlined_call_operand.<no memory space> [shape: f32[1,1], index: 7, kind: input, shape index: {}]
  %s8 = inlined_call_operand.hbm [shape: bf16[128,128], index: 8, kind: input, shape index: {}]
  %s9 = inlined_call_operand.vmem [shape: f32[1,128], index: 9, kind: input, shape index: {}]
  %s10 = inlined_call_operand.hbm [shape: bf16[128,128], index: 10, kind: input, shape index: {}]
  %s11 = inlined_call_operand.hbm [shape: f32[16,128], index: 11, kind: output, shape index: {}]
  %s12 = sld [smem:[#allocation0]]
  $region97: #{tpu_custom_call.1} parent=0
    _
  %s14 = ssub.s32 1, %s12
  %s15 = scalar_select 0, %s14, %s12
  %v16 = vstv %s7
  %17 = vst [vmem:[#allocation2] sm:$0x1] %v16
  $region1: #{tpu_custom_call.1} parent=0
    #allocation3 [shape = 'u8[8192]{0}', space=vmem, size = 0x2000, scoped, tag = 'input window, operand 0']
    #allocation4 [shape = 's32[2]{0}', space=sflag, size = 0x8, scoped, tag = 'scoped memory for tpu_custom_call.1']
    #allocation5 [shape = 's32[2]{0}', space=sflag, size = 0x8, scoped, tag = 'scoped memory for tpu_custom_call.1']
    #allocation6 [shape = 'u8[8192]{0}', space=vmem, size = 0x2000, scoped, tag = 'input window, operand 1']
    #allocation7 [shape = 's32[2]{0}', space=sflag, size = 0x8, scoped, tag = 'scoped memory for tpu_custom_call.1']
    #allocation8 [shape = 'u8[65536]{0}', space=vmem, size = 0x10000, scoped, tag = 'input window, operand 4, single buffered']
    #allocation9 [shape = 'u8[32768]{0}', space=vmem, size = 0x8000, scoped, tag = 'input window, operand 8, single buffered']
    #allocation10 [shape = 's32[1]{0}', space=sflag, size = 0x4, scoped, tag = 'scoped memory for tpu_custom_call.1']
    #allocation11 [shape = 'u8[32768]{0}', space=vmem, size = 0x8000, scoped, tag = 'input window, operand 10, single buffered']
    #allocation12 [shape = 'u8[8192]{0}', space=vmem, size = 0x2000, scoped, tag = 'output window, operand 0']
    %18 = vsyncpa [#allocation4], 0
    %s19 = scalar_lea.sflag [#allocation4], 1
    %20 = vsyncpa %s19, 0
    %21 = vsyncpa [#allocation7], 0
    %s22 = scalar_lea.sflag [#allocation7], 1
    %23 = vsyncpa %s22, 0
    %24 = vsyncpa [#allocation10], 0
    %25 = vsyncpa [#allocation5], 0
    %s26 = scalar_lea.sflag [#allocation5], 1
    %27 = vsyncpa %s26, 0
    loop: start=0, step=1, limit=4
    $region2: #{tpu_custom_call.1} parent=1 // loop_pre_header
      _
    $region3: #{tpu_custom_call.1} parent=1 // loop_header
      %s29 = sphi 0, %s33
      %p30 = scmp.ge.s32.totalorder %s29, 4
      %s39 = sphi 0, %s41
      %s42 = sphi 0, %s39
      %s43 = sphi 0, %s42
      %s59 = sphi 0, %s43
      %s65 = sphi 0, %s67
      %s68 = sphi 0, %s65
      %s69 = sphi 0, %s68
      %s85 = sphi 0, %s69
      %s89 = sphi 0, %s89
      %s91 = sphi 0, %s89
      %s92 = sphi 0, %s91
      %s106 = sphi 0, %s92
      %s110 = sphi 0, %s110
      %s112 = sphi 0, %s110
      %s113 = sphi 0, %s112
      %s127 = sphi 0, %s113
      %s131 = sphi 0, %s131
      %s133 = sphi 0, %s131
      %s134 = sphi 0, %s133
      %s148 = sphi 0, %s134
      %s152 = sphi 0, %s152
      %s154 = sphi 0, %s152
      %s155 = sphi 0, %s154
      %s169 = sphi 0, %s155
      %s173 = sphi 0, %s173
      %s175 = sphi 0, %s173
      %s176 = sphi 0, %s175
      %s190 = sphi 0, %s176
      %s194 = sphi 0, %s194
      %s196 = sphi 0, %s194
      %s197 = sphi 0, %s196
      %s211 = sphi 0, %s197
      %s215 = sphi 0, %s215
      %s217 = sphi 0, %s215
      %s218 = sphi 0, %s217
      %s232 = sphi 0, %s218
      %s236 = sphi 0, %s236
      %s238 = sphi 0, %s236
      %s239 = sphi 0, %s238
      %s253 = sphi 0, %s239
      %s257 = sphi 0, %s257
      %s259 = sphi 0, %s257
      %s260 = sphi 0, %s259
      %s274 = sphi 0, %s260
      %s280 = sphi 0, %s282
      %s283 = sphi 0, %s280
      %s284 = sphi 0, %s283
      %s300 = sphi 0, %s284
    $region4: #{tpu_custom_call.1} parent=1 // loop_header_branch
      %32 = sbr.rel (%p30) target = $region8
    $region5: #{tpu_custom_call.1} parent=1 // loop_body
      %s34 = ssub.s32 %s29, 1
      %s35 = ssub.s32 %s29, 2
      %s36 = sadd.s32 %s29, 1
      %s37 = ssub.s32 %s29, %s36
      %p38 = scmp.eq.s32.totalorder %s37, 0
      %s40 = sadd.s32 %s39, 1
      %s41 = scalar_select %p38, %s39, %s40
      %p44 = pneg %p38
      %p45 = scmp.eq.s32.totalorder %s29, 1
      %p46 = por %p44, %p45
      %p47 = scmp.ne.s32.totalorder %s39, %s42
      %p48 = scmp.eq.s32.totalorder %s29, 0
      %p49 = por %p47, %p48
      %p50 = scmp.ne.s32.totalorder %s39, %s42
      %p51 = scmp.eq.s32.totalorder %s34, 1
      %p52 = por %p50, %p51
      %p53 = scmp.ne.s32.totalorder %s42, %s43
      %p54 = scmp.eq.s32.totalorder %s34, 0
      %p55 = por %p53, %p54
      %p56 = scmp.ne.s32.totalorder %s42, %s43
      %p57 = scmp.eq.s32.totalorder %s35, 1
      %p58 = por %p56, %p57
      %p60 = scmp.ne.s32.totalorder %s43, %s59
      %p61 = scmp.eq.s32.totalorder %s35, 0
      %p62 = por %p60, %p61
      %s63 = ssub.s32 %s29, %s36
      %p64 = scmp.eq.s32.totalorder %s63, 0
      %s66 = sadd.s32 %s65, 1
      %s67 = scalar_select %p64, %s65, %s66
      %p70 = pneg %p64
      %p71 = scmp.eq.s32.totalorder %s29, 1
      %p72 = por %p70, %p71
      %p73 = scmp.ne.s32.totalorder %s65, %s68
      %p74 = scmp.eq.s32.totalorder %s29, 0
      %p75 = por %p73, %p74
      %p76 = scmp.ne.s32.totalorder %s65, %s68
      %p77 = scmp.eq.s32.totalorder %s34, 1
      %p78 = por %p76, %p77
      %p79 = scmp.ne.s32.totalorder %s68, %s69
      %p80 = scmp.eq.s32.totalorder %s34, 0
      %p81 = por %p79, %p80
      %p82 = scmp.ne.s32.totalorder %s68, %s69
      %p83 = scmp.eq.s32.totalorder %s35, 1
      %p84 = por %p82, %p83
      %p86 = scmp.ne.s32.totalorder %s69, %s85
      %p87 = scmp.eq.s32.totalorder %s35, 0
      %p88 = por %p86, %p87
      %s90 = sadd.s32 %s89, 1
      %p93 = scmp.eq.s32.totalorder %s29, 1
      %p94 = scmp.ne.s32.totalorder %s89, %s91
      %p95 = scmp.eq.s32.totalorder %s29, 0
      %p96 = por %p94, %p95
      %p97 = scmp.ne.s32.totalorder %s89, %s91
      %p98 = scmp.eq.s32.totalorder %s34, 1
      %p99 = por %p97, %p98
      %p100 = scmp.ne.s32.totalorder %s91, %s92
      %p101 = scmp.eq.s32.totalorder %s34, 0
      %p102 = por %p100, %p101
      %p103 = scmp.ne.s32.totalorder %s91, %s92
      %p104 = scmp.eq.s32.totalorder %s35, 1
      %p105 = por %p103, %p104
      %p107 = scmp.ne.s32.totalorder %s92, %s106
      %p108 = scmp.eq.s32.totalorder %s35, 0
      %p109 = por %p107, %p108
      %s111 = sadd.s32 %s110, 1
      %p114 = scmp.eq.s32.totalorder %s29, 1
      %p115 = scmp.ne.s32.totalorder %s110, %s112
      %p116 = scmp.eq.s32.totalorder %s29, 0
      %p117 = por %p115, %p116
      %p118 = scmp.ne.s32.totalorder %s110, %s112
      %p119 = scmp.eq.s32.totalorder %s34, 1
      %p120 = por %p118, %p119
      %p121 = scmp.ne.s32.totalorder %s112, %s113
      %p122 = scmp.eq.s32.totalorder %s34, 0
      %p123 = por %p121, %p122
      %p124 = scmp.ne.s32.totalorder %s112, %s113
      %p125 = scmp.eq.s32.totalorder %s35, 1
      %p126 = por %p124, %p125
      %p128 = scmp.ne.s32.totalorder %s113, %s127
      %p129 = scmp.eq.s32.totalorder %s35, 0
      %p130 = por %p128, %p129
      %s132 = sadd.s32 %s131, 1
      %p135 = scmp.eq.s32.totalorder %s29, 1
      %p136 = scmp.ne.s32.totalorder %s131, %s133
      %p137 = scmp.eq.s32.totalorder %s29, 0
      %p138 = por %p136, %p137
      %p139 = scmp.ne.s32.totalorder %s131, %s133
      %p140 = scmp.eq.s32.totalorder %s34, 1
      %p141 = por %p139, %p140
      %p142 = scmp.ne.s32.totalorder %s133, %s134
      %p143 = scmp.eq.s32.totalorder %s34, 0
      %p144 = por %p142, %p143
      %p145 = scmp.ne.s32.totalorder %s133, %s134
      %p146 = scmp.eq.s32.totalorder %s35, 1
      %p147 = por %p145, %p146
      %p149 = scmp.ne.s32.totalorder %s134, %s148
      %p150 = scmp.eq.s32.totalorder %s35, 0
      %p151 = por %p149, %p150
      %s153 = sadd.s32 %s152, 1
      %p156 = scmp.eq.s32.totalorder %s29, 1
      %p157 = scmp.ne.s32.totalorder %s152, %s154
      %p158 = scmp.eq.s32.totalorder %s29, 0
      %p159 = por %p157, %p158
      %p160 = scmp.ne.s32.totalorder %s152, %s154
      %p161 = scmp.eq.s32.totalorder %s34, 1
      %p162 = por %p160, %p161
      %p163 = scmp.ne.s32.totalorder %s154, %s155
      %p164 = scmp.eq.s32.totalorder %s34, 0
      %p165 = por %p163, %p164
      %p166 = scmp.ne.s32.totalorder %s154, %s155
      %p167 = scmp.eq.s32.totalorder %s35, 1
      %p168 = por %p166, %p167
      %p170 = scmp.ne.s32.totalorder %s155, %s169
      %p171 = scmp.eq.s32.totalorder %s35, 0
      %p172 = por %p170, %p171
      %s174 = sadd.s32 %s173, 1
      %p177 = scmp.eq.s32.totalorder %s29, 1
      %p178 = scmp.ne.s32.totalorder %s173, %s175
      %p179 = scmp.eq.s32.totalorder %s29, 0
      %p180 = por %p178, %p179
      %p181 = scmp.ne.s32.totalorder %s173, %s175
      %p182 = scmp.eq.s32.totalorder %s34, 1
      %p183 = por %p181, %p182
      %p184 = scmp.ne.s32.totalorder %s175, %s176
      %p185 = scmp.eq.s32.totalorder %s34, 0
      %p186 = por %p184, %p185
      %p187 = scmp.ne.s32.totalorder %s175, %s176
      %p188 = scmp.eq.s32.totalorder %s35, 1
      %p189 = por %p187, %p188
      %p191 = scmp.ne.s32.totalorder %s176, %s190
      %p192 = scmp.eq.s32.totalorder %s35, 0
      %p193 = por %p191, %p192
      %s195 = sadd.s32 %s194, 1
      %p198 = scmp.eq.s32.totalorder %s29, 1
      %p199 = scmp.ne.s32.totalorder %s194, %s196
      %p200 = scmp.eq.s32.totalorder %s29, 0
      %p201 = por %p199, %p200
      %p202 = scmp.ne.s32.totalorder %s194, %s196
      %p203 = scmp.eq.s32.totalorder %s34, 1
      %p204 = por %p202, %p203
      %p205 = scmp.ne.s32.totalorder %s196, %s197
      %p206 = scmp.eq.s32.totalorder %s34, 0
      %p207 = por %p205, %p206
      %p208 = scmp.ne.s32.totalorder %s196, %s197
      %p209 = scmp.eq.s32.totalorder %s35, 1
      %p210 = por %p208, %p209
      %p212 = scmp.ne.s32.totalorder %s197, %s211
      %p213 = scmp.eq.s32.totalorder %s35, 0
      %p214 = por %p212, %p213
      %s216 = sadd.s32 %s215, 1
      %p219 = scmp.eq.s32.totalorder %s29, 1
      %p220 = scmp.ne.s32.totalorder %s215, %s217
      %p221 = scmp.eq.s32.totalorder %s29, 0
      %p222 = por %p220, %p221
      %p223 = scmp.ne.s32.totalorder %s215, %s217
      %p224 = scmp.eq.s32.totalorder %s34, 1
      %p225 = por %p223, %p224
      %p226 = scmp.ne.s32.totalorder %s217, %s218
      %p227 = scmp.eq.s32.totalorder %s34, 0
      %p228 = por %p226, %p227
      %p229 = scmp.ne.s32.totalorder %s217, %s218
      %p230 = scmp.eq.s32.totalorder %s35, 1
      %p231 = por %p229, %p230
      %p233 = scmp.ne.s32.totalorder %s218, %s232
      %p234 = scmp.eq.s32.totalorder %s35, 0
      %p235 = por %p233, %p234
      %s237 = sadd.s32 %s236, 1
      %p240 = scmp.eq.s32.totalorder %s29, 1
      %p241 = scmp.ne.s32.totalorder %s236, %s238
      %p242 = scmp.eq.s32.totalorder %s29, 0
      %p243 = por %p241, %p242
      %p244 = scmp.ne.s32.totalorder %s236, %s238
      %p245 = scmp.eq.s32.totalorder %s34, 1
      %p246 = por %p244, %p245
      %p247 = scmp.ne.s32.totalorder %s238, %s239
      %p248 = scmp.eq.s32.totalorder %s34, 0
      %p249 = por %p247, %p248
      %p250 = scmp.ne.s32.totalorder %s238, %s239
      %p251 = scmp.eq.s32.totalorder %s35, 1
      %p252 = por %p250, %p251
      %p254 = scmp.ne.s32.totalorder %s239, %s253
      %p255 = scmp.eq.s32.totalorder %s35, 0
      %p256 = por %p254, %p255
      %s258 = sadd.s32 %s257, 1
      %p261 = scmp.eq.s32.totalorder %s29, 1
      %p262 = scmp.ne.s32.totalorder %s257, %s259
      %p263 = scmp.eq.s32.totalorder %s29, 0
      %p264 = por %p262, %p263
      %p265 = scmp.ne.s32.totalorder %s257, %s259
      %p266 = scmp.eq.s32.totalorder %s34, 1
      %p267 = por %p265, %p266
      %p268 = scmp.ne.s32.totalorder %s259, %s260
      %p269 = scmp.eq.s32.totalorder %s34, 0
      %p270 = por %p268, %p269
      %p271 = scmp.ne.s32.totalorder %s259, %s260
      %p272 = scmp.eq.s32.totalorder %s35, 1
      %p273 = por %p271, %p272
      %p275 = scmp.ne.s32.totalorder %s260, %s274
      %p276 = scmp.eq.s32.totalorder %s35, 0
      %p277 = por %p275, %p276
      %s278 = ssub.s32 %s29, %s36
      %p279 = scmp.eq.s32.totalorder %s278, 0
      %s281 = sadd.s32 %s280, 1
      %s282 = scalar_select %p279, %s280, %s281
      %p285 = pneg %p279
      %p286 = scmp.eq.s32.totalorder %s29, 1
      %p287 = por %p285, %p286
      %p288 = scmp.ne.s32.totalorder %s280, %s283
      %p289 = scmp.eq.s32.totalorder %s29, 0
      %p290 = por %p288, %p289
      %p291 = scmp.ne.s32.totalorder %s280, %s283
      %p292 = scmp.eq.s32.totalorder %s34, 1
      %p293 = por %p291, %p292
      %p294 = scmp.ne.s32.totalorder %s283, %s284
      %p295 = scmp.eq.s32.totalorder %s34, 0
      %p296 = por %p294, %p295
      %p297 = scmp.ne.s32.totalorder %s283, %s284
      %p298 = scmp.eq.s32.totalorder %s35, 1
      %p299 = por %p297, %p298
      %p301 = scmp.ne.s32.totalorder %s284, %s300
      %p302 = scmp.eq.s32.totalorder %s35, 0
      %p303 = por %p301, %p302
      %p304 = scmp.le.s32.totalorder 1, %s29
      %p305 = scmp.lt.s32.totalorder %s29, 3
      %p306 = pnand %p304, %p305
      %p307 = pneg %p306
      // Predicated region
      $region9: #{tpu_custom_call.1} parent=5 // pred_check
        _
      $region10: #{tpu_custom_call.1} parent=5 // pred_check_branch
        %309 = sbr.rel (%p306) target = $region12
      $region11: #{tpu_custom_call.1} parent=5 // pred_region
        %s310 = ssub.s32 %s29, 1
        // Predicated region
        $region13: #{tpu_custom_call.1} parent=11 // pred_check
          %p311 = pneg %p102
        $region14: #{tpu_custom_call.1} parent=11 // pred_check_branch
          %313 = sbr.rel (%p311) target = $region16
        $region15: #{tpu_custom_call.1} parent=11 // pred_region
          _
        $region16: #{tpu_custom_call.1} parent=11 // pred_fallthru
          _
        // Predicated region
        $region17: #{tpu_custom_call.1} parent=11 // pred_check
          %p314 = pneg %p123
        $region18: #{tpu_custom_call.1} parent=11 // pred_check_branch
          %316 = sbr.rel (%p314) target = $region20
        $region19: #{tpu_custom_call.1} parent=11 // pred_region
          _
        $region20: #{tpu_custom_call.1} parent=11 // pred_fallthru
          _
        // Predicated region
        $region21: #{tpu_custom_call.1} parent=11 // pred_check
          %p317 = pneg %p144
        $region22: #{tpu_custom_call.1} parent=11 // pred_check_branch
          %319 = sbr.rel (%p317) target = $region24
        $region23: #{tpu_custom_call.1} parent=11 // pred_region
          %s321 = ssub.s32 2048, 2048
          %322 = vsyncadd [#allocation7], %s321
          %s323 = sshll.u32 [#allocation8], 4
          %s324 = int_to_ptr.vmem [resolvable:$true] %s323
          %329 = dma.hbm_to_vmem [thread:$0]  %s4, 2048, %s324, [#allocation7], 128, 128, 8
        $region24: #{tpu_custom_call.1} parent=11 // pred_fallthru
          _
        // Predicated region
        $region25: #{tpu_custom_call.1} parent=11 // pred_check
          %p330 = pneg %p165
        $region26: #{tpu_custom_call.1} parent=11 // pred_check_branch
          %332 = sbr.rel (%p330) target = $region28
        $region27: #{tpu_custom_call.1} parent=11 // pred_region
          _
        $region28: #{tpu_custom_call.1} parent=11 // pred_fallthru
          _
        // Predicated region
        $region29: #{tpu_custom_call.1} parent=11 // pred_check
          %p333 = pneg %p186
        $region30: #{tpu_custom_call.1} parent=11 // pred_check_branch
          %335 = sbr.rel (%p333) target = $region32
        $region31: #{tpu_custom_call.1} parent=11 // pred_region
          _
        $region32: #{tpu_custom_call.1} parent=11 // pred_fallthru
          _
        // Predicated region
        $region33: #{tpu_custom_call.1} parent=11 // pred_check
          %p336 = pneg %p207
        $region34: #{tpu_custom_call.1} parent=11 // pred_check_branch
          %338 = sbr.rel (%p336) target = $region36
        $region35: #{tpu_custom_call.1} parent=11 // pred_region
          _
        $region36: #{tpu_custom_call.1} parent=11 // pred_fallthru
          _
        // Predicated region
        $region37: #{tpu_custom_call.1} parent=11 // pred_check
          %p339 = pneg %p228
        $region38: #{tpu_custom_call.1} parent=11 // pred_check_branch
          %341 = sbr.rel (%p339) target = $region40
        $region39: #{tpu_custom_call.1} parent=11 // pred_region
          %s343 = ssub.s32 1024, 1024
          %344 = vsyncadd [#allocation10], %s343
          %s345 = sshll.u32 [#allocation9], 4
          %s346 = int_to_ptr.vmem [resolvable:$true] %s345
          %351 = dma.hbm_to_vmem [thread:$0]  %s8, 1024, %s346, [#allocation10], 64, 64, 4
        $region40: #{tpu_custom_call.1} parent=11 // pred_fallthru
          _
        // Predicated region
        $region41: #{tpu_custom_call.1} parent=11 // pred_check
          %p352 = pneg %p249
        $region42: #{tpu_custom_call.1} parent=11 // pred_check_branch
          %354 = sbr.rel (%p352) target = $region44
        $region43: #{tpu_custom_call.1} parent=11 // pred_region
          _
        $region44: #{tpu_custom_call.1} parent=11 // pred_fallthru
          _
        // Predicated region
        $region45: #{tpu_custom_call.1} parent=11 // pred_check
          %p355 = pneg %p270
        $region46: #{tpu_custom_call.1} parent=11 // pred_check_branch
          %357 = sbr.rel (%p355) target = $region48
        $region47: #{tpu_custom_call.1} parent=11 // pred_region
          %s359 = ssub.s32 1024, 1024
          %360 = vsyncadd [#allocation10], %s359
          %s361 = sshll.u32 [#allocation11], 4
          %s362 = int_to_ptr.vmem [resolvable:$true] %s361
          %367 = dma.hbm_to_vmem [thread:$0]  %s10, 1024, %s362, [#allocation10], 64, 64, 4
        $region48: #{tpu_custom_call.1} parent=11 // pred_fallthru
          _
      $region12: #{tpu_custom_call.1} parent=5 // pred_fallthru
        _
      %p368 = scmp.lt.s32.totalorder %s29, 2
      // Predicated region
      $region49: #{tpu_custom_call.1} parent=5 // pred_check
        %p369 = pneg %p368
      $region50: #{tpu_custom_call.1} parent=5 // pred_check_branch
        %371 = sbr.rel (%p369) target = $region52
      $region51: #{tpu_custom_call.1} parent=5 // pred_region
        // Predicated region
        $region53: #{tpu_custom_call.1} parent=51 // pred_check
          %p372 = pneg %p49
        $region54: #{tpu_custom_call.1} parent=51 // pred_check_branch
          %374 = sbr.rel (%p372) target = $region56
        $region55: #{tpu_custom_call.1} parent=51 // pred_region
          %s375 = sand.u32 %s39, 1
          %s376 = scalar_lea.sflag [#allocation4], %s375
          %s377 = sand.u32 %s39, 1
          %s378 = smul.addr %s377, 8
          %s379 = scalar_lea.vmem [#allocation3], %s378
          %s381 = ssub.s32 128, 128
          %382 = vsyncadd %s376, %s381
          %s383 = smul.addr %s29, 128
          %s384 = scalar_lea.hbm %s0, %s383
          %s386 = sshll.u32 %s379, 4
          %s387 = int_to_ptr.vmem [resolvable:$true] %s386
          %389 = dma.hbm_to_vmem [thread:$0]  %s384, 128, %s387, %s376
        $region56: #{tpu_custom_call.1} parent=51 // pred_fallthru
          _
        // Predicated region
        $region57: #{tpu_custom_call.1} parent=51 // pred_check
          %p390 = pneg %p75
        $region58: #{tpu_custom_call.1} parent=51 // pred_check_branch
          %392 = sbr.rel (%p390) target = $region60
        $region59: #{tpu_custom_call.1} parent=51 // pred_region
          %s393 = sand.u32 %s29, 1
          %s394 = scalar_lea.sflag [#allocation7], %s393
          %s395 = sand.u32 %s65, 1
          %s396 = smul.addr %s395, 8
          %s397 = scalar_lea.vmem [#allocation6], %s396
          %s399 = ssub.s32 128, 128
          %400 = vsyncadd %s394, %s399
          %s401 = smul.addr %s29, 128
          %s402 = scalar_lea.hbm %s1, %s401
          %s404 = sshll.u32 %s397, 4
          %s405 = int_to_ptr.vmem [resolvable:$true] %s404
          %407 = dma.hbm_to_vmem [thread:$0]  %s402, 128, %s405, %s394
        $region60: #{tpu_custom_call.1} parent=51 // pred_fallthru
          _
      $region52: #{tpu_custom_call.1} parent=5 // pred_fallthru
        _
      %p408 = scmp.le.s32.totalorder 1, %s29
      %p409 = scmp.lt.s32.totalorder %s29, 3
      %p410 = pnand %p408, %p409
      %p411 = pneg %p410
      // Predicated region
      $region61: #{tpu_custom_call.1} parent=5 // pred_check
        _
      $region62: #{tpu_custom_call.1} parent=5 // pred_check_branch
        %413 = sbr.rel (%p410) target = $region64
      $region63: #{tpu_custom_call.1} parent=5 // pred_region
        %s414 = ssub.s32 %s29, 1
        %s415 = sand.u32 %s42, 1
        %s416 = scalar_lea.sflag [#allocation4], %s415
        %s417 = sand.u32 %s42, 1
        %s418 = smul.addr %s417, 8
        %s419 = scalar_lea.vmem [#allocation3], %s418
        // Predicated region
        $region65: #{tpu_custom_call.1} parent=63 // pred_check
          %p420 = pneg %p55
        $region66: #{tpu_custom_call.1} parent=63 // pred_check_branch
          %422 = sbr.rel (%p420) target = $region68
        $region67: #{tpu_custom_call.1} parent=63 // pred_region
          %423 = dma.done %s416, 128
        $region68: #{tpu_custom_call.1} parent=63 // pred_fallthru
          _
        %s424 = sand.u32 %s34, 1
        %s425 = scalar_lea.sflag [#allocation7], %s424
        %s426 = sand.u32 %s68, 1
        %s427 = smul.addr %s426, 8
        %s428 = scalar_lea.vmem [#allocation6], %s427
        // Predicated region
        $region69: #{tpu_custom_call.1} parent=63 // pred_check
          %p429 = pneg %p81
        $region70: #{tpu_custom_call.1} parent=63 // pred_check_branch
          %431 = sbr.rel (%p429) target = $region72
        $region71: #{tpu_custom_call.1} parent=63 // pred_region
          %432 = dma.done %s425, 128
        $region72: #{tpu_custom_call.1} parent=63 // pred_fallthru
          _
        // Predicated region
        $region73: #{tpu_custom_call.1} parent=63 // pred_check
          %p433 = pneg %p144
        $region74: #{tpu_custom_call.1} parent=63 // pred_check_branch
          %435 = sbr.rel (%p433) target = $region76
        $region75: #{tpu_custom_call.1} parent=63 // pred_region
          %436 = dma.done [#allocation7], 2048
        $region76: #{tpu_custom_call.1} parent=63 // pred_fallthru
          _
        // Predicated region
        $region77: #{tpu_custom_call.1} parent=63 // pred_check
          %p437 = pneg %p228
        $region78: #{tpu_custom_call.1} parent=63 // pred_check_branch
          %439 = sbr.rel (%p437) target = $region80
        $region79: #{tpu_custom_call.1} parent=63 // pred_region
          %440 = dma.done [#allocation10], 1024
        $region80: #{tpu_custom_call.1} parent=63 // pred_fallthru
          _
        // Predicated region
        $region81: #{tpu_custom_call.1} parent=63 // pred_check
          %p441 = pneg %p270
        $region82: #{tpu_custom_call.1} parent=63 // pred_check_branch
          %443 = sbr.rel (%p441) target = $region84
        $region83: #{tpu_custom_call.1} parent=63 // pred_region
          %444 = dma.done [#allocation10], 1024
        $region84: #{tpu_custom_call.1} parent=63 // pred_fallthru
          _
        %s445 = sand.u32 %s42, 1
        %s446 = scalar_lea.sflag [#allocation4], %s445
        %s447 = sand.u32 %s42, 1
        %s448 = smul.addr %s447, 8
        %s449 = scalar_lea.vmem [#allocation3], %s448
        %p450 = pneg %p55
        %p451 = pneg %p52
        %s452 = sand.u32 %s34, 1
        %s453 = scalar_lea.sflag [#allocation7], %s452
        %s454 = sand.u32 %s68, 1
        %s455 = smul.addr %s454, 8
        %s456 = scalar_lea.vmem [#allocation6], %s455
        %p457 = pneg %p81
        %p458 = pneg %p78
        %p459 = pneg %p102
        %p460 = pneg %p99
        %p461 = pneg %p123
        %p462 = pneg %p120
        %p463 = pneg %p144
        %p464 = pneg %p141
        %p465 = pneg %p165
        %p466 = pneg %p162
        %p467 = pneg %p186
        %p468 = pneg %p183
        %p469 = pneg %p207
        %p470 = pneg %p204
        %p471 = pneg %p228
        %p472 = pneg %p225
        %p473 = pneg %p249
        %p474 = pneg %p246
        %p475 = pneg %p270
        %p476 = pneg %p267
        %p477 = pneg %p296
        %p478 = pneg %p293
        %s479 = sand.u32 %s283, 1
        %s480 = scalar_lea.sflag [#allocation5], %s479
        %s481 = sand.u32 %s283, 1
        %s482 = smul.addr %s481, 8
        %s483 = scalar_lea.vmem [#allocation12], %s482
        %v485 = vld [vmem:[%s419] sm:$0xff]
        %v486 = vld [vmem:[%s428] sm:$0xff]
        %v487 = vld [vmem:[%s2] sm:$0x1]
        %v489 = vlaneseq
        %v490 = vshrl.u32 %v489, 7
        %v491 = vsub.s32 0, %v490
        %v492 = vrot.slane %v487, %v491
        %v494 = vmul.f32 %v485, %v492
        %v495 = vld [vmem:[%s3] sm:$0x1]
        %v497 = vlaneseq
        %v498 = vshrl.u32 %v497, 7
        %v499 = vsub.s32 0, %v498
        %v500 = vrot.slane %v495, %v499
        %v502 = vadd.f32 %v494, %v500
        %v503 = vld [vmem:[#allocation8] sm:$0xff]
        %v504 = vld [vmem:[#allocation8 + $0x8] sm:$0xff]
        %v505 = vld [vmem:[#allocation8 + $0x10] sm:$0xff]
        %v506 = vld [vmem:[#allocation8 + $0x18] sm:$0xff]
        %v507 = vld [vmem:[#allocation8 + $0x20] sm:$0xff]
        %v508 = vld [vmem:[#allocation8 + $0x28] sm:$0xff]
        %v509 = vld [vmem:[#allocation8 + $0x30] sm:$0xff]
        %v510 = vld [vmem:[#allocation8 + $0x38] sm:$0xff]
        %v511 = vld [vmem:[#allocation8 + $0x40] sm:$0xff]
        %v512 = vld [vmem:[#allocation8 + $0x48] sm:$0xff]
        %v513 = vld [vmem:[#allocation8 + $0x50] sm:$0xff]
        %v514 = vld [vmem:[#allocation8 + $0x58] sm:$0xff]
        %v515 = vld [vmem:[#allocation8 + $0x60] sm:$0xff]
        %v516 = vld [vmem:[#allocation8 + $0x68] sm:$0xff]
        %v517 = vld [vmem:[#allocation8 + $0x70] sm:$0xff]
        %v518 = vld [vmem:[#allocation8 + $0x78] sm:$0xff]
        %519 = vmatprep.subr.mxu0 0.0
        %520 = vmatpush1.msra.mxu0 %v503
        %521 = vmatprep.subr.mxu0 0.0
        %522 = vmatpush1.msra.mxu0 %v504
        %523 = vmatprep.subr.mxu0 0.0
        %524 = vmatpush1.msra.mxu0 %v505
        %525 = vmatprep.subr.mxu0 0.0
        %526 = vmatpush1.msra.mxu0 %v506
        %527 = vmatprep.subr.mxu0 0.0
        %528 = vmatpush1.msra.mxu0 %v507
        %529 = vmatprep.subr.mxu0 0.0
        %530 = vmatpush1.msra.mxu0 %v508
        %531 = vmatprep.subr.mxu0 0.0
        %532 = vmatpush1.msra.mxu0 %v509
        %533 = vmatprep.subr.mxu0 0.0
        %534 = vmatpush1.msra.mxu0 %v510
        %535 = vmatprep.subr.mxu0 0.0
        %536 = vmatpush1.msra.mxu0 %v511
        %537 = vmatprep.subr.mxu0 0.0
        %538 = vmatpush1.msra.mxu0 %v512
        %539 = vmatprep.subr.mxu0 0.0
        %540 = vmatpush1.msra.mxu0 %v513
        %541 = vmatprep.subr.mxu0 0.0
        %542 = vmatpush1.msra.mxu0 %v514
        %543 = vmatprep.subr.mxu0 0.0
        %544 = vmatpush1.msra.mxu0 %v515
        %545 = vmatprep.subr.mxu0 0.0
        %546 = vmatpush1.msra.mxu0 %v516
        %547 = vmatprep.subr.mxu0 0.0
        %548 = vmatpush1.msra.mxu0 %v517
        %549 = vmatprep.subr.mxu0 0.0
        %550 = vmatpush1.msra.mxu0 %v518
        %551 = vmatprep.subr.mxu0 0.0
        %552 = vmatpush1.msra.mxu0 0.0
        %553 = vmatprep.subr.mxu0 0.0
        %554 = vmatpush1.msra.mxu0 0.0
        %555 = vmatprep.subr.mxu0 0.0
        %556 = vmatpush1.msra.mxu0 0.0
        %557 = vmatprep.subr.mxu0 0.0
        %558 = vmatpush1.msra.mxu0 0.0
        %559 = vmatprep.subr.mxu0 0.0
        %560 = vmatpush1.msra.mxu0 0.0
        %561 = vmatprep.subr.mxu0 0.0
        %562 = vmatpush1.msra.mxu0 0.0
        %563 = vmatprep.subr.mxu0 0.0
        %564 = vmatpush1.msra.mxu0 0.0
        %565 = vmatprep.subr.mxu0 0.0
        %566 = vmatpush1.msra.mxu0 0.0
        %567 = vmatprep.subr.mxu0 0.0
        %568 = vmatpush1.msra.mxu0 0.0
        %569 = vmatprep.subr.mxu0 0.0
        %570 = vmatpush1.msra.mxu0 0.0
        %571 = vmatprep.subr.mxu0 0.0
        %572 = vmatpush1.msra.mxu0 0.0
        %573 = vmatprep.subr.mxu0 0.0
        %574 = vmatpush1.msra.mxu0 0.0
        %575 = vmatprep.subr.mxu0 0.0
        %576 = vmatpush1.msra.mxu0 0.0
        %577 = vmatprep.subr.mxu0 0.0
        %578 = vmatpush1.msra.mxu0 0.0
        %579 = vmatprep.subr.mxu0 0.0
        %580 = vmatpush1.msra.mxu0 0.0
        %581 = vmatprep.subr.mxu0 0.0
        %582 = vmatpush1.msra.mxu0 0.0
        %583 = vmatprep.mubr.f32.mxu0 0.0
        %584 = vmatmul.mubr.f32.gmra.mrb[0].mxu0 %v486
        %v585 = vpop.f32.mrb[0].mxu0
        %v586 = vadd.f32 0.0, %v585
        %v587 = vpop.f32.mrb[0].mxu0
        %588 = vdwg.mxu0
        %v589 = vld [vmem:[%s5] sm:$0x1]
        %v591 = vlaneseq
        %v592 = vshrl.u32 %v591, 7
        %v593 = vsub.s32 0, %v592
        %v594 = vrot.slane %v589, %v593
        %v596 = vmul.f32 %v502, %v594
        %v597 = vld [vmem:[%s6] sm:$0x1]
        %v599 = vlaneseq
        %v600 = vshrl.u32 %v599, 7
        %v601 = vsub.s32 0, %v600
        %v602 = vrot.slane %v597, %v601
        %v604 = vmul.f32 %v586, %v602
        %v605 = vadd.f32 %v596, %v604
        %606 = vadd.xlane.f32.xlu0 %v605
        %v607 = vpop.xlane.xlu0 %606
        %v608 = vld [vmem:[#allocation2] sm:$0x1]
        %v610 = vlaneseq
        %v611 = vshrl.u32 %v610, 7
        %v612 = vsub.s32 0, %v611
        %v613 = vrot.slane %v608, %v612
        %v615 = vadd.f32 %v607, %v613
        %v616 = vxor.u32 %v615, 2147483648
        %v617 = vmul.f32 %v616, 1.442695
        %v618 = vpow.pop %v617
        %v619 = vadd.f32 %v618, 1.0
        %v620 = vrcp.pop %v619
        %v621 = vmul.f32 1.0, %v620
        %623 = vset.pattern.permute.xlu0 0
        %624 = vperm.xlu0 %623, %v621
        %v625 = vpop.permute.xlu0 %624
        %v627 = vmul.f32 %v625, %v502
        %v628 = vsub.f32 1.0, %v621
        %630 = vset.pattern.permute.xlu0 0
        %631 = vperm.xlu0 %630, %v628
        %v632 = vpop.permute.xlu0 %631
        %v634 = vmul.f32 %v632, %v586
        %v635 = vadd.f32 %v627, %v634
        %v636 = vpack.c.bf16 %v635, %v635
        %v637 = vld [vmem:[#allocation9] sm:$0xf]
        %v638 = vld [vmem:[#allocation9 + $0x4] sm:$0xf]
        %v639 = vld [vmem:[#allocation9 + $0x8] sm:$0xf]
        %v640 = vld [vmem:[#allocation9 + $0xc] sm:$0xf]
        %v641 = vld [vmem:[#allocation9 + $0x10] sm:$0xf]
        %v642 = vld [vmem:[#allocation9 + $0x14] sm:$0xf]
        %v643 = vld [vmem:[#allocation9 + $0x18] sm:$0xf]
        %v644 = vld [vmem:[#allocation9 + $0x1c] sm:$0xf]
        %v645 = vld [vmem:[#allocation9 + $0x20] sm:$0xf]
        %v646 = vld [vmem:[#allocation9 + $0x24] sm:$0xf]
        %v647 = vld [vmem:[#allocation9 + $0x28] sm:$0xf]
        %v648 = vld [vmem:[#allocation9 + $0x2c] sm:$0xf]
        %v649 = vld [vmem:[#allocation9 + $0x30] sm:$0xf]
        %v650 = vld [vmem:[#allocation9 + $0x34] sm:$0xf]
        %v651 = vld [vmem:[#allocation9 + $0x38] sm:$0xf]
        %v652 = vld [vmem:[#allocation9 + $0x3c] sm:$0xf]
        %v653 = vld [vmem:[%s9] sm:$0x1]
        %v655 = vlaneseq
        %v656 = vshrl.u32 %v655, 7
        %v657 = vsub.s32 0, %v656
        %v658 = vrot.slane %v653, %v657
        %v676 = vunpack.c.l.b16 %v637
        %v677 = vunpack.c.l.b16 %v638
        %v678 = vunpack.c.l.b16 %v639
        %v679 = vunpack.c.l.b16 %v640
        %v680 = vunpack.c.l.b16 %v641
        %v681 = vunpack.c.l.b16 %v642
        %v682 = vunpack.c.l.b16 %v643
        %v683 = vunpack.c.l.b16 %v644
        %v684 = vunpack.c.l.b16 %v645
        %v685 = vunpack.c.l.b16 %v646
        %v686 = vunpack.c.l.b16 %v647
        %v687 = vunpack.c.l.b16 %v648
        %v688 = vunpack.c.l.b16 %v649
        %v689 = vunpack.c.l.b16 %v650
        %v690 = vunpack.c.l.b16 %v651
        %v691 = vunpack.c.l.b16 %v652
        %v692 = vpack.c.b16 %v677, %v676
        %v693 = vpack.c.b16 %v679, %v678
        %v694 = vpack.c.b16 %v681, %v680
        %v695 = vpack.c.b16 %v683, %v682
        %v696 = vpack.c.b16 %v685, %v684
        %v697 = vpack.c.b16 %v687, %v686
        %v698 = vpack.c.b16 %v689, %v688
        %v699 = vpack.c.b16 %v691, %v690
        %708 = vmatprep.subr.bf16.mxu0 0
        %709 = vmatpush1.bf16.msra.mxu0 %v692
        %710 = vmatprep.subr.bf16.mxu0 0
        %711 = vmatpush1.bf16.msra.mxu0 %v693
        %712 = vmatprep.subr.bf16.mxu0 0
        %713 = vmatpush1.bf16.msra.mxu0 %v694
        %714 = vmatprep.subr.bf16.mxu0 0
        %715 = vmatpush1.bf16.msra.mxu0 %v695
        %716 = vmatprep.subr.bf16.mxu0 0
        %717 = vmatpush1.bf16.msra.mxu0 %v696
        %718 = vmatprep.subr.bf16.mxu0 0
        %719 = vmatpush1.bf16.msra.mxu0 %v697
        %720 = vmatprep.subr.bf16.mxu0 0
        %721 = vmatpush1.bf16.msra.mxu0 %v698
        %722 = vmatprep.subr.bf16.mxu0 0
        %723 = vmatpush1.bf16.msra.mxu0 %v699
        %724 = vmatprep.subr.bf16.mxu0 0
        %725 = vmatpush1.bf16.msra.mxu0 0
        %726 = vmatprep.subr.bf16.mxu0 0
        %727 = vmatpush1.bf16.msra.mxu0 0
        %728 = vmatprep.subr.bf16.mxu0 0
        %729 = vmatpush1.bf16.msra.mxu0 0
        %730 = vmatprep.subr.bf16.mxu0 0
        %731 = vmatpush1.bf16.msra.mxu0 0
        %732 = vmatprep.subr.bf16.mxu0 0
        %733 = vmatpush1.bf16.msra.mxu0 0
        %734 = vmatprep.subr.bf16.mxu0 0
        %735 = vmatpush1.bf16.msra.mxu0 0
        %736 = vmatprep.subr.bf16.mxu0 0
        %737 = vmatpush1.bf16.msra.mxu0 0
        %738 = vmatprep.subr.bf16.mxu0 0
        %739 = vmatpush1.bf16.msra.mxu0 0
        %740 = vmatprep.mubr.bf16.mxu0 0
        %741 = vmatmul.mubr.bf16.gmra.mrb[0].mxu0 %v636
        %v742 = vpop.f32.mrb[0].mxu0
        %v743 = vadd.f32 %v658, %v742
        %v744 = vpop.f32.mrb[0].mxu0
        %v745 = vpop.f32.mrb[0].mxu0
        %v746 = vpop.f32.mrb[0].mxu0
        %747 = vdwg.mxu0
        %v748 = vmax.f32 %v743, 0.0
        %v749 = vpack.c.bf16 %v748, %v748
        %v750 = vld [vmem:[#allocation11] sm:$0xf]
        %v751 = vld [vmem:[#allocation11 + $0x4] sm:$0xf]
        %v752 = vld [vmem:[#allocation11 + $0x8] sm:$0xf]
        %v753 = vld [vmem:[#allocation11 + $0xc] sm:$0xf]
        %v754 = vld [vmem:[#allocation11 + $0x10] sm:$0xf]
        %v755 = vld [vmem:[#allocation11 + $0x14] sm:$0xf]
        %v756 = vld [vmem:[#allocation11 + $0x18] sm:$0xf]
        %v757 = vld [vmem:[#allocation11 + $0x1c] sm:$0xf]
        %v758 = vld [vmem:[#allocation11 + $0x20] sm:$0xf]
        %v759 = vld [vmem:[#allocation11 + $0x24] sm:$0xf]
        %v760 = vld [vmem:[#allocation11 + $0x28] sm:$0xf]
        %v761 = vld [vmem:[#allocation11 + $0x2c] sm:$0xf]
        %v762 = vld [vmem:[#allocation11 + $0x30] sm:$0xf]
        %v763 = vld [vmem:[#allocation11 + $0x34] sm:$0xf]
        %v764 = vld [vmem:[#allocation11 + $0x38] sm:$0xf]
        %v765 = vld [vmem:[#allocation11 + $0x3c] sm:$0xf]
        %v782 = vunpack.c.l.b16 %v750
        %v783 = vunpack.c.l.b16 %v751
        %v784 = vunpack.c.l.b16 %v752
        %v785 = vunpack.c.l.b16 %v753
        %v786 = vunpack.c.l.b16 %v754
        %v787 = vunpack.c.l.b16 %v755
        %v788 = vunpack.c.l.b16 %v756
        %v789 = vunpack.c.l.b16 %v757
        %v790 = vunpack.c.l.b16 %v758
        %v791 = vunpack.c.l.b16 %v759
        %v792 = vunpack.c.l.b16 %v760
        %v793 = vunpack.c.l.b16 %v761
        %v794 = vunpack.c.l.b16 %v762
        %v795 = vunpack.c.l.b16 %v763
        %v796 = vunpack.c.l.b16 %v764
        %v797 = vunpack.c.l.b16 %v765
        %v798 = vpack.c.b16 %v783, %v782
        %v799 = vpack.c.b16 %v785, %v784
        %v800 = vpack.c.b16 %v787, %v786
        %v801 = vpack.c.b16 %v789, %v788
        %v802 = vpack.c.b16 %v791, %v790
        %v803 = vpack.c.b16 %v793, %v792
        %v804 = vpack.c.b16 %v795, %v794
        %v805 = vpack.c.b16 %v797, %v796
        %814 = vmatprep.subr.bf16.mxu0 0
        %815 = vmatpush1.bf16.msra.mxu0 %v798
        %816 = vmatprep.subr.bf16.mxu0 0
        %817 = vmatpush1.bf16.msra.mxu0 %v799
        %818 = vmatprep.subr.bf16.mxu0 0
        %819 = vmatpush1.bf16.msra.mxu0 %v800
        %820 = vmatprep.subr.bf16.mxu0 0
        %821 = vmatpush1.bf16.msra.mxu0 %v801
        %822 = vmatprep.subr.bf16.mxu0 0
        %823 = vmatpush1.bf16.msra.mxu0 %v802
        %824 = vmatprep.subr.bf16.mxu0 0
        %825 = vmatpush1.bf16.msra.mxu0 %v803
        %826 = vmatprep.subr.bf16.mxu0 0
        %827 = vmatpush1.bf16.msra.mxu0 %v804
        %828 = vmatprep.subr.bf16.mxu0 0
        %829 = vmatpush1.bf16.msra.mxu0 %v805
        %830 = vmatprep.subr.bf16.mxu0 0
        %831 = vmatpush1.bf16.msra.mxu0 0
        %832 = vmatprep.subr.bf16.mxu0 0
        %833 = vmatpush1.bf16.msra.mxu0 0
        %834 = vmatprep.subr.bf16.mxu0 0
        %835 = vmatpush1.bf16.msra.mxu0 0
        %836 = vmatprep.subr.bf16.mxu0 0
        %837 = vmatpush1.bf16.msra.mxu0 0
        %838 = vmatprep.subr.bf16.mxu0 0
        %839 = vmatpush1.bf16.msra.mxu0 0
        %840 = vmatprep.subr.bf16.mxu0 0
        %841 = vmatpush1.bf16.msra.mxu0 0
        %842 = vmatprep.subr.bf16.mxu0 0
        %843 = vmatpush1.bf16.msra.mxu0 0
        %844 = vmatprep.subr.bf16.mxu0 0
        %845 = vmatpush1.bf16.msra.mxu0 0
        %846 = vmatprep.mubr.bf16.mxu0 0
        %847 = vmatmul.mubr.bf16.gmra.mrb[0].mxu0 %v749
        %v848 = vpop.f32.mrb[0].mxu0
        %v849 = vadd.f32 0.0, %v848
        %v850 = vpop.f32.mrb[0].mxu0
        %v851 = vpop.f32.mrb[0].mxu0
        %v852 = vpop.f32.mrb[0].mxu0
        %853 = vdwg.mxu0
        %v854 = vlaneseq
        %v855 = vand.u32 %v854, 127
        %vm856 = vcmp.lt.s32.totalorder %v855, 16
        %v857 = vsel %vm856, %v849, -1e+30
        %858 = vmax.xlane.f32.xlu0 %v857
        %v859 = vpop.xlane.xlu0 %858
        %v860 = vsub.f32 %v857, %v859
        %v861 = vmul.f32 %v860, 1.442695
        %v862 = vpow.pop %v861
        %863 = vadd.xlane.f32.xlu0 %v862
        %v864 = vpop.xlane.xlu0 %863
        %v865 = vrcp.pop %v864
        %v866 = vmul.f32 %v862, %v865
        %867 = vst [vmem:[%s483] sm:$0xff] %v866
        %s868 = sand.u32 %s283, 1
        %s869 = scalar_lea.sflag [#allocation5], %s868
        %s870 = sand.u32 %s283, 1
        %s871 = smul.addr %s870, 8
        %s872 = scalar_lea.vmem [#allocation12], %s871
        // Predicated region
        $region85: #{tpu_custom_call.1} parent=63 // pred_check
          %p873 = pneg %p293
        $region86: #{tpu_custom_call.1} parent=63 // pred_check_branch
          %875 = sbr.rel (%p873) target = $region88
        $region87: #{tpu_custom_call.1} parent=63 // pred_region
          %s877 = ssub.s32 128, 128
          %878 = vsyncadd %s869, %s877
          %s879 = smul.addr %s34, 128
          %s880 = scalar_lea.hbm %s11, %s879
          %s882 = sshll.u32 %s872, 4
          %s883 = int_to_ptr.vmem [resolvable:$true] %s882
          %885 = dma.vmem_to_hbm [thread:$0]  %s883, 128, %s880, %s869
        $region88: #{tpu_custom_call.1} parent=63 // pred_fallthru
          _
      $region64: #{tpu_custom_call.1} parent=5 // pred_fallthru
        _
      %p886 = scmp.le.s32.totalorder 2, %s29
      // Predicated region
      $region89: #{tpu_custom_call.1} parent=5 // pred_check
        %p887 = pneg %p886
      $region90: #{tpu_custom_call.1} parent=5 // pred_check_branch
        %889 = sbr.rel (%p887) target = $region92
      $region91: #{tpu_custom_call.1} parent=5 // pred_region
        %s890 = ssub.s32 %s29, 2
        // Predicated region
        $region93: #{tpu_custom_call.1} parent=91 // pred_check
          %p891 = pneg %p299
        $region94: #{tpu_custom_call.1} parent=91 // pred_check_branch
          %893 = sbr.rel (%p891) target = $region96
        $region95: #{tpu_custom_call.1} parent=91 // pred_region
          %s894 = sand.u32 %s284, 1
          %s895 = scalar_lea.sflag [#allocation5], %s894
          %s896 = sand.u32 %s284, 1
          %s897 = smul.addr %s896, 8
          %s898 = scalar_lea.vmem [#allocation12], %s897
          %899 = dma.done %s895, 128
        $region96: #{tpu_custom_call.1} parent=91 // pred_fallthru
          _
      $region92: #{tpu_custom_call.1} parent=5 // pred_fallthru
        _
    $region6: #{tpu_custom_call.1} parent=1 // loop_footer
      %s33 = sadd.s32 1, %s29
    $region7: #{tpu_custom_call.1} parent=1 // loop_footer_branch
      %28 = sbr.rel target = $region3
    $region8: #{tpu_custom_call.1} parent=1 // loop_exit
      _
    %900 = vsyncpa [#allocation4], 1
    %s901 = scalar_lea.sflag [#allocation4], 1
    %902 = vsyncpa %s901, 1
    %903 = vsyncpa [#allocation7], 1
    %s904 = scalar_lea.sflag [#allocation7], 1
    %905 = vsyncpa %s904, 1
    %906 = vsyncpa [#allocation10], 1
    %907 = vsyncpa [#allocation5], 1
    %s908 = scalar_lea.sflag [#allocation5], 1
    %909 = vsyncpa %s908, 1

</llo_original>
